<compile_context>
chip_gen: v7x
topology: tpu7x:2x2x1
jax: 0.10.0
libtpu: 0.0.40
codegen_flags: <defaults>
</compile_context>

<pallas_src>
import numpy as np
import jax
import jax.numpy as jnp
from jax.experimental import pallas as pl
from jax.experimental.pallas import tpu as pltpu


def gaussian_smoothing_weights(shape, sigma):
    """Identical to Smooth2D.gaussian_smoothing_weights (numpy, float32)."""
    m, n = [(ss - 1.0) / 2.0 for ss in shape]
    y, x = np.ogrid[-m:m + 1, -n:n + 1]
    h = np.exp(-(x * x + y * y) / (2.0 * sigma * sigma))
    h[h < np.finfo(h.dtype).eps * h.max()] = 0
    sumh = h.sum()
    if sumh != 0:
        h /= sumh
    return h.astype(np.float32)


def _separable_factors(g2d):
    """Rank-1 factorization g2d ~= outer(row, col); returns (row, col) or (None, None)."""
    g = np.asarray(g2d, dtype=np.float64)
    u, s, vt = np.linalg.svd(g)
    approx = s[0] * np.outer(u[:, 0], vt[0])
    if np.max(np.abs(approx - g)) <= 1e-6 * max(float(g.max()), 1e-30):
        r = u[:, 0] * np.sqrt(s[0])
        c = vt[0] * np.sqrt(s[0])
        if r.sum() < 0.0:  # fix SVD sign so taps are non-negative
            r, c = -r, -c
        return tuple(float(v) for v in r), tuple(float(v) for v in c)
    return None, None


def _shift_w_clamp(x, d):
    """out[:, :, j] = x[:, :, clamp(j + d, 0, W-1)] for a (C, H, W) slab."""
    if d == 0:
        return x
    wn = x.shape[2]
    k = abs(d)
    if wn % 128 == 0:
        # Lane-aligned fast path: XLU rotate + VPU boundary select, no concat.
        rolled = pltpu.roll(x, shift=(-d) % wn, axis=2)
        lane = jax.lax.broadcasted_iota(jnp.int32, x.shape, 2)
        if d > 0:
            return jnp.where(lane >= wn - k, x[:, :, wn - 1:wn], rolled)
        return jnp.where(lane < k, x[:, :, 0:1], rolled)
    # Narrow / unaligned lane width: edge-clamped slice + concat (proven path).
    if d > 0:
        parts = [x[:, :, k:]] + [x[:, :, wn - 1:]] * k
    else:
        parts = [x[:, :, :1]] * k + [x[:, :, :wn - k]]
    return jnp.concatenate(parts, axis=2)


def _shift_h_clamp(x, d):
    """out[:, i, :] = x[:, clamp(i + d, 0, H-1), :] for a (C, H, W) slab."""
    if d == 0:
        return x
    hn = x.shape[1]
    k = abs(d)
    if d > 0:
        parts = [x[:, k:, :]] + [x[:, hn - 1:, :]] * k
    else:
        parts = [x[:, :1, :]] * k + [x[:, :hn - k, :]]
    return jnp.concatenate(parts, axis=1)


def _make_smooth2d_kernel(grow, gcol, g2d, width):
    """grow/gcol: 1-D tap tuples (separable path) OR g2d: width x width tuple."""
    pad = width // 2

    def kernel(x_ref, o_ref):
        # x_ref / o_ref: (1, c_blk, H, W) VMEM tiles; operate on the whole slab.
        x = x_ref[0, :, :, :].astype(jnp.float32)        # (c_blk, H, W)
        if g2d is None:
            # Separable: width-tap lane (W) pass, then width-tap sublane (H) pass.
            tmp = None
            for b in range(width):
                if gcol[b] == 0.0:
                    continue
                t = gcol[b] * _shift_w_clamp(x, b - pad)
                tmp = t if tmp is None else tmp + t
            acc = None
            for a in range(width):
                if grow[a] == 0.0:
                    continue
                t = grow[a] * _shift_h_clamp(tmp, a - pad)
                acc = t if acc is None else acc + t
        else:
            # Fallback: full 2-D taps (only if thresholding broke rank-1 structure).
            acc = None
            for a in range(width):
                xs = _shift_h_clamp(x, a - pad)
                for b in range(width):
                    if g2d[a][b] == 0.0:
                        continue
                    t = g2d[a][b] * _shift_w_clamp(xs, b - pad)
                    acc = t if acc is None else acc + t
        o_ref[0, :, :, :] = acc.astype(o_ref.dtype)

    return kernel


def _largest_divisor_leq(c, k):
    k = max(1, min(c, int(k)))
    for d in range(k, 0, -1):
        if c % d == 0:
            return d
    return 1


def smooth2d(x: jax.Array, width: int = 3, std: float = 1.0) -> jax.Array:
    """Pallas forward of Smooth2D: per-channel Gaussian blur, replicate pad."""
    assert width % 2 == 1, "Smooth2D expects an odd filter width"
    n, c, h, w = x.shape
    itemsize = jnp.dtype(x.dtype).itemsize

    g2d_np = gaussian_smoothing_weights([width, width], std)
    grow, gcol = _separable_factors(g2d_np)
    g2d = (None if grow is not None
           else tuple(tuple(float(v) for v in row) for row in g2d_np))

    # ---- block / grid heuristics -------------------------------------------
    plane_bytes = h * w * itemsize
    target_block_bytes = 2 << 20           # ~2 MiB per step amortizes overhead
    if plane_bytes >= target_block_bytes:
        c_blk = 1
    else:
        c_blk = _largest_divisor_leq(c, target_block_bytes // max(plane_bytes, 1))
    # Guarantee >= 2 grid steps when possible (pipelining + v7x megacore).
    if n * (c // c_blk) < 2 and c_blk > 1:
        c_blk = _largest_divisor_leq(c, c_blk // 2)

    # ---- generation-aware VMEM budget --------------------------------------
    try:
        vmem_cap = int(pltpu.get_tpu_info().vmem_capacity_bytes)
    except Exception:
        vmem_cap = 64 << 20                 # conservative (v7x-sized) fallback
    vmem_budget = (vmem_cap * 3) // 4       # ~48 MiB on v7x, ~96 MiB on v5e/v6e

    def vmem_needed(cb):
        blk = cb * h * w * itemsize         # one in block == one out block
        f32_plane = cb * h * w * 4
        live_f32 = width + 3                # x_f32, shifted tap, 2 accumulators, slack
        return 2 * (blk + blk) + live_f32 * f32_plane + (2 << 20)

    while c_blk > 1 and vmem_needed(c_blk) > vmem_budget:
        c_blk = _largest_divisor_leq(c, c_blk - 1)

    vmem_limit = int(min(max(vmem_needed(c_blk), 32 << 20), vmem_budget))

    kernel = _make_smooth2d_kernel(grow, gcol, g2d, width)
    return pl.pallas_call(
        kernel,
        out_shape=jax.ShapeDtypeStruct((n, c, h, w), x.dtype),
        grid=(n, c // c_blk),
        in_specs=[pl.BlockSpec((1, c_blk, h, w), lambda i, j: (i, j, 0, 0))],
        out_specs=pl.BlockSpec((1, c_blk, h, w), lambda i, j: (i, j, 0, 0)),
        compiler_params=pltpu.CompilerParams(
            dimension_semantics=("parallel", "parallel"),
            vmem_limit_bytes=vmem_limit,
        ),
    )(x)


def _reference(x, width, std):
    """Plain-JAX reference: replicate pad + depthwise 2-D Gaussian conv."""
    _, _, h, w = x.shape
    p = width // 2
    g = gaussian_smoothing_weights([width, width], std)
    xp = jnp.pad(x, ((0, 0), (0, 0), (p, p), (p, p)), mode="edge")
    ref = jnp.zeros_like(x)
    for a in range(width):
        for b in range(width):
            ref = ref + g[a, b] * xp[:, :, a:a + h, b:b + w]
    return ref


if __name__ == "__main__":
    num_input_channels, width, std = 4, 3, 1.0
    key0, key1 = jax.random.split(jax.random.PRNGKey(0))

    # Case 1: module-sized input (narrow W -> slice+concat lane path).
    x = jax.random.uniform(key0, (2, num_input_channels, 16, 16), dtype=jnp.float32)
    out = jax.block_until_ready(smooth2d(x, width=width, std=std))
    ref = _reference(x, width, std)
    assert out.shape == x.shape
    assert jnp.allclose(out, ref, atol=1e-5, rtol=1e-5)

    # Case 2: lane-aligned W (exercises the pltpu.roll fast path).
    x2 = jax.random.uniform(key1, (1, 8, 16, 128), dtype=jnp.float32)
    out2 = jax.block_until_ready(smooth2d(x2, width=width, std=std))
    ref2 = _reference(x2, width, std)
    assert out2.shape == x2.shape
    assert jnp.allclose(out2, ref2, atol=1e-5, rtol=1e-5)

    print("KERNEL_OK")
</pallas_src>

<mosaic_0001>
module attributes {stable_mosaic.version = 11 : i64} {
  func.func @kernel(%arg0: i32, %arg1: i32, %arg2: memref<1x4x16x16xf32, #tpu.memory_space<vmem>>, %arg3: memref<1x4x16x16xf32, #tpu.memory_space<vmem>>) attributes {dimension_semantics = [#tpu.dimension_semantics<parallel>, #tpu.dimension_semantics<parallel>], iteration_bounds = array<i64: 2, 1>, scalar_prefetch = 0 : i64, scratch_operands = 0 : i64, tpu.core_type = #tpu.core_type<tc>, window_params = [{transform_indices = @transform_0, window_bounds = array<i64: 1, 4, 16, 16>}, {transform_indices = @transform_1, window_bounds = array<i64: 1, 4, 16, 16>}]} {
    %c0 = arith.constant 0 : index
    %c0_0 = arith.constant 0 : index
    %c0_1 = arith.constant 0 : index
    %c0_2 = arith.constant 0 : index
    %0 = vector.load %arg2[%c0, %c0_0, %c0_1, %c0_2] : memref<1x4x16x16xf32, #tpu.memory_space<vmem>>, vector<1x4x16x16xf32>
    %1 = vector.shape_cast %0 : vector<1x4x16x16xf32> to vector<4x16x16xf32>
    %2 = vector.extract_strided_slice %1 {offsets = [0, 0, 0], sizes = [4, 16, 1], strides = [1, 1, 1]} : vector<4x16x16xf32> to vector<4x16x1xf32>
    %3 = vector.extract_strided_slice %1 {offsets = [0, 0, 0], sizes = [4, 16, 15], strides = [1, 1, 1]} : vector<4x16x16xf32> to vector<4x16x15xf32>
    %4 = tpu.concatenate %2, %3 in 2 : vector<4x16x1xf32>, vector<4x16x15xf32> -> vector<4x16x16xf32>
    %cst = arith.constant 0.274068624 : f32
    %5 = vector.broadcast %cst : f32 to vector<4x16x16xf32>
    %6 = arith.mulf %5, %4 : vector<4x16x16xf32>
    %cst_3 = arith.constant 0.451862752 : f32
    %7 = vector.broadcast %cst_3 : f32 to vector<4x16x16xf32>
    %8 = arith.mulf %7, %1 : vector<4x16x16xf32>
    %9 = arith.addf %6, %8 : vector<4x16x16xf32>
    %10 = vector.extract_strided_slice %1 {offsets = [0, 0, 1], sizes = [4, 16, 15], strides = [1, 1, 1]} : vector<4x16x16xf32> to vector<4x16x15xf32>
    %11 = vector.extract_strided_slice %1 {offsets = [0, 0, 15], sizes = [4, 16, 1], strides = [1, 1, 1]} : vector<4x16x16xf32> to vector<4x16x1xf32>
    %12 = tpu.concatenate %10, %11 in 2 : vector<4x16x15xf32>, vector<4x16x1xf32> -> vector<4x16x16xf32>
    %cst_4 = arith.constant 0.274068624 : f32
    %13 = vector.broadcast %cst_4 : f32 to vector<4x16x16xf32>
    %14 = arith.mulf %13, %12 : vector<4x16x16xf32>
    %15 = arith.addf %9, %14 : vector<4x16x16xf32>
    %16 = vector.extract_strided_slice %15 {offsets = [0, 0, 0], sizes = [4, 1, 16], strides = [1, 1, 1]} : vector<4x16x16xf32> to vector<4x1x16xf32>
    %17 = vector.extract_strided_slice %15 {offsets = [0, 0, 0], sizes = [4, 15, 16], strides = [1, 1, 1]} : vector<4x16x16xf32> to vector<4x15x16xf32>
    %18 = tpu.concatenate %16, %17 in 1 : vector<4x1x16xf32>, vector<4x15x16xf32> -> vector<4x16x16xf32>
    %cst_5 = arith.constant 0.274068624 : f32
    %19 = vector.broadcast %cst_5 : f32 to vector<4x16x16xf32>
    %20 = arith.mulf %19, %18 : vector<4x16x16xf32>
    %cst_6 = arith.constant 0.451862752 : f32
    %21 = vector.broadcast %cst_6 : f32 to vector<4x16x16xf32>
    %22 = arith.mulf %21, %15 : vector<4x16x16xf32>
    %23 = arith.addf %20, %22 : vector<4x16x16xf32>
    %24 = vector.extract_strided_slice %15 {offsets = [0, 1, 0], sizes = [4, 15, 16], strides = [1, 1, 1]} : vector<4x16x16xf32> to vector<4x15x16xf32>
    %25 = vector.extract_strided_slice %15 {offsets = [0, 15, 0], sizes = [4, 1, 16], strides = [1, 1, 1]} : vector<4x16x16xf32> to vector<4x1x16xf32>
    %26 = tpu.concatenate %24, %25 in 1 : vector<4x15x16xf32>, vector<4x1x16xf32> -> vector<4x16x16xf32>
    %cst_7 = arith.constant 0.274068624 : f32
    %27 = vector.broadcast %cst_7 : f32 to vector<4x16x16xf32>
    %28 = arith.mulf %27, %26 : vector<4x16x16xf32>
    %29 = arith.addf %23, %28 : vector<4x16x16xf32>
    %c0_8 = arith.constant 0 : index
    %c0_9 = arith.constant 0 : index
    %c0_10 = arith.constant 0 : index
    %c0_11 = arith.constant 0 : index
    %30 = vector.load %arg3[%c0_8, %c0_9, %c0_10, %c0_11] : memref<1x4x16x16xf32, #tpu.memory_space<vmem>>, vector<1x4x16x16xf32>
    %31 = vector.shape_cast %30 : vector<1x4x16x16xf32> to vector<4x16x16xf32>
    %32 = vector.shape_cast %29 : vector<4x16x16xf32> to vector<1x4x16x16xf32>
    tpu.vector_store %arg3[%c0_8, %c0_9, %c0_10, %c0_11], %32 {strides = array<i32>} : memref<1x4x16x16xf32, #tpu.memory_space<vmem>>, vector<1x4x16x16xf32>,
    return
  }
  func.func @transform_0(%arg0: i32, %arg1: i32) -> (i32, i32, i32, i32) {
    %c0_i32 = arith.constant 0 : i32
    %c0_i32_0 = arith.constant 0 : i32
    %c0_i32_1 = arith.constant 0 : i32
    return %arg0, %arg1, %c0_i32, %c0_i32_0 : i32, i32, i32, i32
  }
  func.func @transform_1(%arg0: i32, %arg1: i32) -> (i32, i32, i32, i32) {
    %c0_i32 = arith.constant 0 : i32
    %c0_i32_0 = arith.constant 0 : i32
    %c0_i32_1 = arith.constant 0 : i32
    return %arg0, %arg1, %c0_i32, %c0_i32_0 : i32, i32, i32, i32
  }
}

</mosaic_0001>

<llo_original>
// kernel: tpu_custom_call.1
$region0: #{tpu_custom_call.1}
  #allocation0 [shape = 'u32[]', space=smem, size = 0x4, offset = 0x4, fixed_abs, tag = 'smem constant byte address 0x4 - core index']
  #allocation1 [shape = 'u32[144,128]{1,0:T(1,128)}', space=vmem, size = 0x12000, scoped, tag = 'internal scratch']
  %s0 = inlined_call_operand.hbm [shape: f32[2,4,16,16], index: 0, kind: input, shape index: {}]
  %s1 = inlined_call_operand.hbm [shape: f32[2,4,16,16], index: 1, kind: output, shape index: {}]
  %s2 = sld [smem:[#allocation0]]
  $region41: #{tpu_custom_call.1} parent=0
    _
  %s4 = ssub.s32 1, %s2
  %s5 = scalar_select 0, %s4, %s2
  $region1: #{tpu_custom_call.1} parent=0
    #allocation2 [shape = 'u8[65536]{0}', space=vmem, size = 0x10000, scoped, tag = 'input window, operand 0']
    #allocation3 [shape = 's32[2]{0}', space=sflag, size = 0x8, scoped, tag = 'scoped memory for tpu_custom_call.1']
    #allocation4 [shape = 's32[2]{0}', space=sflag, size = 0x8, scoped, tag = 'scoped memory for tpu_custom_call.1']
    #allocation5 [shape = 'u8[65536]{0}', space=vmem, size = 0x10000, scoped, tag = 'output window, operand 0']
    %6 = vsyncpa [#allocation3], 0
    %s7 = scalar_lea.sflag [#allocation3], 1
    %8 = vsyncpa %s7, 0
    %9 = vsyncpa [#allocation4], 0
    %s10 = scalar_lea.sflag [#allocation4], 1
    %11 = vsyncpa %s10, 0
    loop: start=0, step=1, limit=4
    $region2: #{tpu_custom_call.1} parent=1 // loop_pre_header
      _
    $region3: #{tpu_custom_call.1} parent=1 // loop_header
      %s13 = sphi 0, %s17
      %p14 = scmp.ge.s32.totalorder %s13, 4
      %s20 = sphi 0, %s32
      %s21 = sphi 0, %s28
      %s22 = sphi 0, %s20
      %s23 = sphi 0, %s21
      %s24 = sphi 0, %s22
      %s25 = sphi 0, %s23
      %s37 = sphi 0, %s39
      %s40 = sphi 0, %s37
      %s41 = sphi 0, %s40
      %s57 = sphi 0, %s41
      %s65 = sphi 0, %s67
      %s68 = sphi 0, %s65
      %s69 = sphi 0, %s68
      %s85 = sphi 0, %s69
    $region4: #{tpu_custom_call.1} parent=1 // loop_header_branch
      %16 = sbr.rel (%p14) target = $region8
    $region5: #{tpu_custom_call.1} parent=1 // loop_body
      %s18 = ssub.s32 %s13, 1
      %s19 = ssub.s32 %s13, 2
      %s26 = sadd.s32 1, %s21
      %p27 = scmp.ge.s32.totalorder %s26, 1
      %s28 = scalar_select %p27, 0, %s26
      %s29 = sadd.s32 1, %s20
      %s30 = scalar_select %p27, %s29, %s20
      %p31 = scmp.ge.s32.totalorder %s30, 2
      %s32 = scalar_select %p31, 0, %s30
      %s33 = ssub.s32 %s20, %s32
      %s34 = ssub.s32 %s21, %s28
      %s35 = sor.u32 %s33, %s34
      %p36 = scmp.eq.s32.totalorder %s35, 0
      %s38 = sadd.s32 %s37, 1
      %s39 = scalar_select %p36, %s37, %s38
      %p42 = pneg %p36
      %p43 = scmp.eq.s32.totalorder %s13, 1
      %p44 = por %p42, %p43
      %p45 = scmp.ne.s32.totalorder %s37, %s40
      %p46 = scmp.eq.s32.totalorder %s13, 0
      %p47 = por %p45, %p46
      %p48 = scmp.ne.s32.totalorder %s37, %s40
      %p49 = scmp.eq.s32.totalorder %s18, 1
      %p50 = por %p48, %p49
      %p51 = scmp.ne.s32.totalorder %s40, %s41
      %p52 = scmp.eq.s32.totalorder %s18, 0
      %p53 = por %p51, %p52
      %p54 = scmp.ne.s32.totalorder %s40, %s41
      %p55 = scmp.eq.s32.totalorder %s19, 1
      %p56 = por %p54, %p55
      %p58 = scmp.ne.s32.totalorder %s41, %s57
      %p59 = scmp.eq.s32.totalorder %s19, 0
      %p60 = por %p58, %p59
      %s61 = ssub.s32 %s20, %s32
      %s62 = ssub.s32 %s21, %s28
      %s63 = sor.u32 %s61, %s62
      %p64 = scmp.eq.s32.totalorder %s63, 0
      %s66 = sadd.s32 %s65, 1
      %s67 = scalar_select %p64, %s65, %s66
      %p70 = pneg %p64
      %p71 = scmp.eq.s32.totalorder %s13, 1
      %p72 = por %p70, %p71
      %p73 = scmp.ne.s32.totalorder %s65, %s68
      %p74 = scmp.eq.s32.totalorder %s13, 0
      %p75 = por %p73, %p74
      %p76 = scmp.ne.s32.totalorder %s65, %s68
      %p77 = scmp.eq.s32.totalorder %s18, 1
      %p78 = por %p76, %p77
      %p79 = scmp.ne.s32.totalorder %s68, %s69
      %p80 = scmp.eq.s32.totalorder %s18, 0
      %p81 = por %p79, %p80
      %p82 = scmp.ne.s32.totalorder %s68, %s69
      %p83 = scmp.eq.s32.totalorder %s19, 1
      %p84 = por %p82, %p83
      %p86 = scmp.ne.s32.totalorder %s69, %s85
      %p87 = scmp.eq.s32.totalorder %s19, 0
      %p88 = por %p86, %p87
      %p89 = scmp.le.s32.totalorder 1, %s13
      %p90 = scmp.lt.s32.totalorder %s13, 3
      %p91 = pnand %p89, %p90
      %p92 = pneg %p91
      // Predicated region
      $region9: #{tpu_custom_call.1} parent=5 // pred_check
        _
      $region10: #{tpu_custom_call.1} parent=5 // pred_check_branch
        %94 = sbr.rel (%p91) target = $region12
      $region11: #{tpu_custom_call.1} parent=5 // pred_region
        %s95 = ssub.s32 %s13, 1
      $region12: #{tpu_custom_call.1} parent=5 // pred_fallthru
        _
      %p96 = scmp.lt.s32.totalorder %s13, 2
      // Predicated region
      $region13: #{tpu_custom_call.1} parent=5 // pred_check
        %p97 = pneg %p96
      $region14: #{tpu_custom_call.1} parent=5 // pred_check_branch
        %99 = sbr.rel (%p97) target = $region16
      $region15: #{tpu_custom_call.1} parent=5 // pred_region
        // Predicated region
        $region17: #{tpu_custom_call.1} parent=15 // pred_check
          %p100 = pneg %p47
        $region18: #{tpu_custom_call.1} parent=15 // pred_check_branch
          %102 = sbr.rel (%p100) target = $region20
        $region19: #{tpu_custom_call.1} parent=15 // pred_region
          %s103 = sand.u32 %s37, 1
          %s104 = scalar_lea.sflag [#allocation3], %s103
          %s105 = sand.u32 %s37, 1
          %s106 = smul.addr %s105, 64
          %s107 = scalar_lea.vmem [#allocation2], %s106
          %s108 = smul.u32 4, %s21
          %s110 = ssub.s32 1024, 1024
          %111 = vsyncadd %s104, %s110
          %s112 = smul.addr %s108, 2
          %s113 = smul.addr %s20, 8
          %s114 = sadd.s32 %s112, %s113
          %s115 = smul.addr %s114, 128
          %s116 = scalar_lea.hbm %s0, %s115
          %s117 = sshll.u32 %s107, 4
          %s118 = int_to_ptr.vmem [resolvable:$true] %s117
          %123 = dma.hbm_to_vmem [thread:$0]  %s116, 1024, %s118, %s104, 128, 128, 8
        $region20: #{tpu_custom_call.1} parent=15 // pred_fallthru
          _
      $region16: #{tpu_custom_call.1} parent=5 // pred_fallthru
        _
      %p124 = scmp.le.s32.totalorder 1, %s13
      %p125 = scmp.lt.s32.totalorder %s13, 3
      %p126 = pnand %p124, %p125
      %p127 = pneg %p126
      // Predicated region
      $region21: #{tpu_custom_call.1} parent=5 // pred_check
        _
      $region22: #{tpu_custom_call.1} parent=5 // pred_check_branch
        %129 = sbr.rel (%p126) target = $region24
      $region23: #{tpu_custom_call.1} parent=5 // pred_region
        %s130 = ssub.s32 %s13, 1
        %s131 = sand.u32 %s40, 1
        %s132 = scalar_lea.sflag [#allocation3], %s131
        %s133 = sand.u32 %s40, 1
        %s134 = smul.addr %s133, 64
        %s135 = scalar_lea.vmem [#allocation2], %s134
        // Predicated region
        $region25: #{tpu_custom_call.1} parent=23 // pred_check
          %p136 = pneg %p53
        $region26: #{tpu_custom_call.1} parent=23 // pred_check_branch
          %138 = sbr.rel (%p136) target = $region28
        $region27: #{tpu_custom_call.1} parent=23 // pred_region
          %139 = dma.done %s132, 1024
        $region28: #{tpu_custom_call.1} parent=23 // pred_fallthru
          _
        %s140 = sand.u32 %s40, 1
        %s141 = scalar_lea.sflag [#allocation3], %s140
        %s142 = sand.u32 %s40, 1
        %s143 = smul.addr %s142, 64
        %s144 = scalar_lea.vmem [#allocation2], %s143
        %p145 = pneg %p53
        %p146 = pneg %p50
        %p147 = pneg %p81
        %p148 = pneg %p78
        %s149 = sand.u32 %s68, 1
        %s150 = scalar_lea.sflag [#allocation4], %s149
        %s151 = sand.u32 %s68, 1
        %s152 = smul.addr %s151, 64
        %s153 = scalar_lea.vmem [#allocation5], %s152
        %s154 = smul.u32 4, %s23
        %s155 = smul.u32 4, %s23
        %v156 = vld [vmem:[%s135] sm:$0xff]
        %v157 = vld [vmem:[%s135 + $0x8] sm:$0xff]
        %v158 = vld [vmem:[%s135 + $0x10] sm:$0xff]
        %v159 = vld [vmem:[%s135 + $0x18] sm:$0xff]
        %v160 = vld [vmem:[%s135 + $0x20] sm:$0xff]
        %v161 = vld [vmem:[%s135 + $0x28] sm:$0xff]
        %v162 = vld [vmem:[%s135 + $0x30] sm:$0xff]
        %v163 = vld [vmem:[%s135 + $0x38] sm:$0xff]
        %172 = vrot.lane.b32.xlu0 %v156, 1
        %v173 = vpop.permute.xlu0 %172
        %174 = vrot.lane.b32.xlu0 %v157, 1
        %v175 = vpop.permute.xlu0 %174
        %176 = vrot.lane.b32.xlu0 %v158, 1
        %v177 = vpop.permute.xlu0 %176
        %178 = vrot.lane.b32.xlu0 %v159, 1
        %v179 = vpop.permute.xlu0 %178
        %180 = vrot.lane.b32.xlu0 %v160, 1
        %v181 = vpop.permute.xlu0 %180
        %182 = vrot.lane.b32.xlu0 %v161, 1
        %v183 = vpop.permute.xlu0 %182
        %184 = vrot.lane.b32.xlu0 %v162, 1
        %v185 = vpop.permute.xlu0 %184
        %186 = vrot.lane.b32.xlu0 %v163, 1
        %v187 = vpop.permute.xlu0 %186
        %vm196 = vcmask 7168
        %v197 = vsel %vm196, %v156, %v173
        %v198 = vsel %vm196, %v157, %v175
        %v199 = vsel %vm196, %v158, %v177
        %v200 = vsel %vm196, %v159, %v179
        %v201 = vsel %vm196, %v160, %v181
        %v202 = vsel %vm196, %v161, %v183
        %v203 = vsel %vm196, %v162, %v185
        %v204 = vsel %vm196, %v163, %v187
        %v205 = vmul.f32 %v197, 0.27406862
        %v206 = vmul.f32 %v198, 0.27406862
        %v207 = vmul.f32 %v199, 0.27406862
        %v208 = vmul.f32 %v200, 0.27406862
        %v209 = vmul.f32 %v201, 0.27406862
        %v210 = vmul.f32 %v202, 0.27406862
        %v211 = vmul.f32 %v203, 0.27406862
        %v212 = vmul.f32 %v204, 0.27406862
        %v213 = vmul.f32 %v156, 0.45186275
        %v214 = vmul.f32 %v157, 0.45186275
        %v215 = vmul.f32 %v158, 0.45186275
        %v216 = vmul.f32 %v159, 0.45186275
        %v217 = vmul.f32 %v160, 0.45186275
        %v218 = vmul.f32 %v161, 0.45186275
        %v219 = vmul.f32 %v162, 0.45186275
        %v220 = vmul.f32 %v163, 0.45186275
        %v221 = vadd.f32 %v205, %v213
        %v222 = vadd.f32 %v206, %v214
        %v223 = vadd.f32 %v207, %v215
        %v224 = vadd.f32 %v208, %v216
        %v225 = vadd.f32 %v209, %v217
        %v226 = vadd.f32 %v210, %v218
        %v227 = vadd.f32 %v211, %v219
        %v228 = vadd.f32 %v212, %v220
        %229 = vrot.lane.b32.xlu0 %v156, 127
        %v230 = vpop.permute.xlu0 %229
        %231 = vrot.lane.b32.xlu0 %v157, 127
        %v232 = vpop.permute.xlu0 %231
        %233 = vrot.lane.b32.xlu0 %v158, 127
        %v234 = vpop.permute.xlu0 %233
        %235 = vrot.lane.b32.xlu0 %v159, 127
        %v236 = vpop.permute.xlu0 %235
        %237 = vrot.lane.b32.xlu0 %v160, 127
        %v238 = vpop.permute.xlu0 %237
        %239 = vrot.lane.b32.xlu0 %v161, 127
        %v240 = vpop.permute.xlu0 %239
        %241 = vrot.lane.b32.xlu0 %v162, 127
        %v242 = vpop.permute.xlu0 %241
        %243 = vrot.lane.b32.xlu0 %v163, 127
        %v244 = vpop.permute.xlu0 %243
        %vm253 = vcmask 121856
        %v254 = vsel %vm253, %v230, %v156
        %v255 = vsel %vm253, %v232, %v157
        %v256 = vsel %vm253, %v234, %v158
        %v257 = vsel %vm253, %v236, %v159
        %v258 = vsel %vm253, %v238, %v160
        %v259 = vsel %vm253, %v240, %v161
        %v260 = vsel %vm253, %v242, %v162
        %v261 = vsel %vm253, %v244, %v163
        %v262 = vmul.f32 %v254, 0.27406862
        %v263 = vmul.f32 %v255, 0.27406862
        %v264 = vmul.f32 %v256, 0.27406862
        %v265 = vmul.f32 %v257, 0.27406862
        %v266 = vmul.f32 %v258, 0.27406862
        %v267 = vmul.f32 %v259, 0.27406862
        %v268 = vmul.f32 %v260, 0.27406862
        %v269 = vmul.f32 %v261, 0.27406862
        %v270 = vadd.f32 %v221, %v262
        %v271 = vadd.f32 %v222, %v263
        %v272 = vadd.f32 %v223, %v264
        %v273 = vadd.f32 %v224, %v265
        %v274 = vadd.f32 %v225, %v266
        %v275 = vadd.f32 %v226, %v267
        %v276 = vadd.f32 %v227, %v268
        %v277 = vadd.f32 %v228, %v269
        %vm286 = vcmask 1040384
        %v287 = vrot.slane %v270, 7
        %v288 = vrot.slane %v271, 7
        %v289 = vsel %vm286, %v287, %v288
        %v290 = vrot.slane %v272, 7
        %v291 = vrot.slane %v273, 7
        %v292 = vsel %vm286, %v290, %v291
        %v293 = vrot.slane %v274, 7
        %v294 = vrot.slane %v275, 7
        %v295 = vsel %vm286, %v293, %v294
        %v296 = vrot.slane %v276, 7
        %v297 = vrot.slane %v277, 7
        %v298 = vsel %vm286, %v296, %v297
        %v307 = vsel %vm286, %v270, %v287
        %v308 = vsel %vm286, %v272, %v290
        %v309 = vsel %vm286, %v274, %v293
        %v310 = vsel %vm286, %v276, %v296
        %v311 = vmul.f32 %v307, 0.27406862
        %v312 = vmul.f32 %v289, 0.27406862
        %v313 = vmul.f32 %v308, 0.27406862
        %v314 = vmul.f32 %v292, 0.27406862
        %v315 = vmul.f32 %v309, 0.27406862
        %v316 = vmul.f32 %v295, 0.27406862
        %v317 = vmul.f32 %v310, 0.27406862
        %v318 = vmul.f32 %v298, 0.27406862
        %v319 = vmul.f32 %v270, 0.45186275
        %v320 = vmul.f32 %v271, 0.45186275
        %v321 = vmul.f32 %v272, 0.45186275
        %v322 = vmul.f32 %v273, 0.45186275
        %v323 = vmul.f32 %v274, 0.45186275
        %v324 = vmul.f32 %v275, 0.45186275
        %v325 = vmul.f32 %v276, 0.45186275
        %v326 = vmul.f32 %v277, 0.45186275
        %v327 = vadd.f32 %v311, %v319
        %v328 = vadd.f32 %v312, %v320
        %v329 = vadd.f32 %v313, %v321
        %v330 = vadd.f32 %v314, %v322
        %v331 = vadd.f32 %v315, %v323
        %v332 = vadd.f32 %v316, %v324
        %v333 = vadd.f32 %v317, %v325
        %v334 = vadd.f32 %v318, %v326
        %vm335 = vcmask 1046528
        %v336 = vrot.slane %v270, 1
        %v337 = vrot.slane %v271, 1
        %v338 = vsel %vm335, %v336, %v337
        %v339 = vrot.slane %v272, 1
        %v340 = vrot.slane %v273, 1
        %v341 = vsel %vm335, %v339, %v340
        %v342 = vrot.slane %v274, 1
        %v343 = vrot.slane %v275, 1
        %v344 = vsel %vm335, %v342, %v343
        %v345 = vrot.slane %v276, 1
        %v346 = vrot.slane %v277, 1
        %v347 = vsel %vm335, %v345, %v346
        %v356 = vsel %vm335, %v337, %v271
        %v357 = vsel %vm335, %v340, %v273
        %v358 = vsel %vm335, %v343, %v275
        %v359 = vsel %vm335, %v346, %v277
        %v360 = vmul.f32 %v338, 0.27406862
        %v361 = vmul.f32 %v356, 0.27406862
        %v362 = vmul.f32 %v341, 0.27406862
        %v363 = vmul.f32 %v357, 0.27406862
        %v364 = vmul.f32 %v344, 0.27406862
        %v365 = vmul.f32 %v358, 0.27406862
        %v366 = vmul.f32 %v347, 0.27406862
        %v367 = vmul.f32 %v359, 0.27406862
        %v368 = vadd.f32 %v327, %v360
        %v369 = vadd.f32 %v328, %v361
        %v370 = vadd.f32 %v329, %v362
        %v371 = vadd.f32 %v330, %v363
        %v372 = vadd.f32 %v331, %v364
        %v373 = vadd.f32 %v332, %v365
        %v374 = vadd.f32 %v333, %v366
        %v375 = vadd.f32 %v334, %v367
        %vm376 = vcmask 130048
        %377 = vst.msk [vmem:[%s153] sm:$0xff] %vm376, %v368
        %378 = vst.msk [vmem:[%s153 + $0x8] sm:$0xff] %vm376, %v369
        %379 = vst.msk [vmem:[%s153 + $0x10] sm:$0xff] %vm376, %v370
        %380 = vst.msk [vmem:[%s153 + $0x18] sm:$0xff] %vm376, %v371
        %381 = vst.msk [vmem:[%s153 + $0x20] sm:$0xff] %vm376, %v372
        %382 = vst.msk [vmem:[%s153 + $0x28] sm:$0xff] %vm376, %v373
        %383 = vst.msk [vmem:[%s153 + $0x30] sm:$0xff] %vm376, %v374
        %384 = vst.msk [vmem:[%s153 + $0x38] sm:$0xff] %vm376, %v375
        %s385 = sand.u32 %s68, 1
        %s386 = scalar_lea.sflag [#allocation4], %s385
        %s387 = sand.u32 %s68, 1
        %s388 = smul.addr %s387, 64
        %s389 = scalar_lea.vmem [#allocation5], %s388
        // Predicated region
        $region29: #{tpu_custom_call.1} parent=23 // pred_check
          %p390 = pneg %p78
        $region30: #{tpu_custom_call.1} parent=23 // pred_check_branch
          %392 = sbr.rel (%p390) target = $region32
        $region31: #{tpu_custom_call.1} parent=23 // pred_region
          %s393 = smul.u32 4, %s23
          %s395 = ssub.s32 1024, 1024
          %396 = vsyncadd %s386, %s395
          %s397 = smul.addr %s393, 2
          %s398 = smul.addr %s22, 8
          %s399 = sadd.s32 %s397, %s398
          %s400 = smul.addr %s399, 128
          %s401 = scalar_lea.hbm %s1, %s400
          %s402 = sshll.u32 %s389, 4
          %s403 = int_to_ptr.vmem [resolvable:$true] %s402
          %408 = dma.vmem_to_hbm [thread:$0]  %s403, 1024, %s401, %s386, 128, 128, 8
        $region32: #{tpu_custom_call.1} parent=23 // pred_fallthru
          _
      $region24: #{tpu_custom_call.1} parent=5 // pred_fallthru
        _
      %p409 = scmp.le.s32.totalorder 2, %s13
      // Predicated region
      $region33: #{tpu_custom_call.1} parent=5 // pred_check
        %p410 = pneg %p409
      $region34: #{tpu_custom_call.1} parent=5 // pred_check_branch
        %412 = sbr.rel (%p410) target = $region36
      $region35: #{tpu_custom_call.1} parent=5 // pred_region
        %s413 = ssub.s32 %s13, 2
        // Predicated region
        $region37: #{tpu_custom_call.1} parent=35 // pred_check
          %p414 = pneg %p84
        $region38: #{tpu_custom_call.1} parent=35 // pred_check_branch
          %416 = sbr.rel (%p414) target = $region40
        $region39: #{tpu_custom_call.1} parent=35 // pred_region
          %s417 = sand.u32 %s69, 1
          %s418 = scalar_lea.sflag [#allocation4], %s417
          %s419 = sand.u32 %s69, 1
          %s420 = smul.addr %s419, 64
          %s421 = scalar_lea.vmem [#allocation5], %s420
          %422 = dma.done %s418, 1024
        $region40: #{tpu_custom_call.1} parent=35 // pred_fallthru
          _
      $region36: #{tpu_custom_call.1} parent=5 // pred_fallthru
        _
    $region6: #{tpu_custom_call.1} parent=1 // loop_footer
      %s17 = sadd.s32 1, %s13
    $region7: #{tpu_custom_call.1} parent=1 // loop_footer_branch
      %12 = sbr.rel target = $region3
    $region8: #{tpu_custom_call.1} parent=1 // loop_exit
      _
    %423 = vsyncpa [#allocation3], 1
    %s424 = scalar_lea.sflag [#allocation3], 1
    %425 = vsyncpa %s424, 1
    %426 = vsyncpa [#allocation4], 1
    %s427 = scalar_lea.sflag [#allocation4], 1
    %428 = vsyncpa %s427, 1

</llo_original>
